<compile_context>
chip_gen: v5e
topology: v5e:2x2
jax: 0.10.0
libtpu: 0.0.40
codegen_flags: <defaults>
</compile_context>

<pallas_src>
import functools

import jax
import jax.numpy as jnp
from jax.experimental import pallas as pl
from jax.experimental.pallas import tpu as pltpu

LANE = 128


def _cas_kernel(x_ref, wcat_ref, b_ref, wc_ref,
                feat_ref, cas_ref, scas_ref, *, num_classes):
    bb, T, D = x_ref.shape

    # ---- Build fused conv LHS: row t = [x[t-1] | x[t] | x[t+1]] -------------
    row = jax.lax.broadcasted_iota(jnp.int32, (T, D), 0)
    chunks = []
    for i in range(bb):                      # bb is tiny & static -> unrolled
        xb = x_ref[i]                        # (T, D) f32
        x_left = jnp.where(row > 0,
                           pltpu.roll(xb, shift=1, axis=0),
                           jnp.zeros_like(xb))
        x_right = jnp.where(row < T - 1,
                            pltpu.roll(xb, shift=T - 1, axis=0),
                            jnp.zeros_like(xb))
        chunks.append(jnp.concatenate([x_left, xb, x_right], axis=-1))  # (T, 3D)
    x_cat = jnp.concatenate(chunks, axis=0) if bb > 1 else chunks[0]    # (bb*T, 3D)

    # ---- Conv1d(k=3, pad=1): single bf16 MXU matmul with K = 3D -------------
    pre = jnp.dot(x_cat.astype(jnp.bfloat16), wcat_ref[...],
                  preferred_element_type=jnp.float32)                   # (bb*T, D)
    feat = jnp.maximum(pre + b_ref[...], 0.0)                           # ReLU, f32

    # ---- 1x1 classifier conv (no bias), lane-padded class dim ---------------
    cas = jnp.dot(feat.astype(jnp.bfloat16), wc_ref[...],
                  preferred_element_type=jnp.float32)                   # (bb*T, CP)

    # ---- Softmax over the real classes (padded columns masked out) ----------
    col = jax.lax.broadcasted_iota(jnp.int32, cas.shape, 1)
    logits = jnp.where(col < num_classes, cas, jnp.float32(-1e30))
    m = jnp.max(logits, axis=-1, keepdims=True)
    e = jnp.exp(logits - m)
    scas = e * pl.reciprocal(jnp.sum(e, axis=-1, keepdims=True), approx=True)

    feat_ref[...] = feat.reshape(bb, T, D).astype(feat_ref.dtype)
    cas_ref[...] = cas.reshape(bb, T, -1).astype(cas_ref.dtype)
    scas_ref[...] = scas.reshape(bb, T, -1).astype(scas_ref.dtype)


def _pick_batch_block(B):
    # v7x: 2 TensorCores/chip -> keep >=2 parallel grid steps.
    # v5e/v6e: single TC -> collapse to one grid step (per-step overhead).
    try:
        kind = jax.devices()[0].device_kind.lower()
    except Exception:
        kind = ""
    if ("v7" in kind or "7x" in kind) and B % 2 == 0:
        return B // 2
    return B


def cas_pallas(x, w_conv, b_conv, w_cls):
    """x: (B, T, D) f32; w_conv: (D, D, 3); b_conv: (D,); w_cls: (C, D)."""
    B, T, D = x.shape
    C = w_cls.shape[0]
    CP = max(LANE, ((C + LANE - 1) // LANE) * LANE)   # lane-dense class width

    bb = _pick_batch_block(B)

    # Fused conv weights: (3D, D) so conv = x_cat @ w_cat (taps stacked on K).
    w_cat = jnp.concatenate(
        [w_conv[:, :, 0].T, w_conv[:, :, 1].T, w_conv[:, :, 2].T], axis=0
    ).astype(jnp.bfloat16)                            # (3D, D)
    b = b_conv.reshape(1, D).astype(jnp.float32)
    wc = jnp.zeros((D, CP), jnp.bfloat16).at[:, :C].set(
        w_cls.T.astype(jnp.bfloat16))                 # (D, CP), zero-padded cols

    out_shapes = (
        jax.ShapeDtypeStruct((B, T, D), jnp.float32),   # feat
        jax.ShapeDtypeStruct((B, T, CP), jnp.float32),  # cas (lane-padded)
        jax.ShapeDtypeStruct((B, T, CP), jnp.float32),  # score_cas (lane-padded)
    )

    grid_spec = pltpu.PrefetchScalarGridSpec(
        num_scalar_prefetch=0,
        grid=(B // bb,),
        in_specs=[
            pl.BlockSpec((bb, T, D), lambda g: (g, 0, 0)),
            pl.BlockSpec((3 * D, D), lambda g: (0, 0)),
            pl.BlockSpec((1, D), lambda g: (0, 0)),
            pl.BlockSpec((D, CP), lambda g: (0, 0)),
        ],
        out_specs=[
            pl.BlockSpec((bb, T, D), lambda g: (g, 0, 0)),
            pl.BlockSpec((bb, T, CP), lambda g: (g, 0, 0)),
            pl.BlockSpec((bb, T, CP), lambda g: (g, 0, 0)),
        ],
    )

    feat, cas_pad, scas_pad = pl.pallas_call(
        functools.partial(_cas_kernel, num_classes=C),
        out_shape=out_shapes,
        grid_spec=grid_spec,
        compiler_params=pltpu.CompilerParams(
            dimension_semantics=("parallel",)),
    )(x, w_cat, b, wc)

    return feat, cas_pad[..., :C], scas_pad[..., :C]


def model_forward(x, params, r_act, r_bkg):
    """Full Model.forward. x: (B, T, D)."""
    T = x.shape[1]
    k_act = T // r_act
    k_bkg = T // r_bkg

    feat, cas, score_cas = cas_pallas(
        x, params["w_conv"], params["b_conv"], params["w_cls"])

    # Per-segment feature magnitude (tiny reduction; kept in glue so every
    # kernel output is a lane-dense 128-wide slab).
    feat_magnitudes = jnp.sqrt(jnp.sum(feat * feat, axis=-1))          # (B, T)
    # Dropout(p=0.7) on ones -> identity in eval mode; magnitudes unchanged.

    # Top-k active segments by feature magnitude.
    _, idx_act = jax.lax.top_k(feat_magnitudes, k_act)                 # (B, k_act)
    feat_act = jnp.take_along_axis(feat, idx_act[..., None], axis=1)   # (B, k_act, D)

    # Bottom-k background segments.
    _, idx_bkg = jax.lax.top_k(-feat_magnitudes, k_bkg)                # (B, k_bkg)
    feat_bkg = jnp.take_along_axis(feat, idx_bkg[..., None], axis=1)   # (B, k_bkg, D)

    # Per-class top-k scores along time.
    topk_scores, _ = jax.lax.top_k(jnp.swapaxes(cas, 1, 2), k_act)     # (B, C, k_act)
    topk_scores = jnp.swapaxes(topk_scores, 1, 2)                      # (B, k_act, C)
    bottomk_scores = jnp.take_along_axis(cas, idx_bkg[..., None], axis=1)  # (B,k_bkg,C)

    score_act = jax.nn.softmax(jnp.mean(topk_scores, axis=1), axis=-1)     # (B, C)
    score_bkg = jax.nn.softmax(jnp.mean(bottomk_scores, axis=1), axis=-1)  # (B, C)

    return score_act, score_bkg, score_cas, feat_act, feat_bkg, feat


def init_params(key, len_feature, num_classes):
    k1, k2, k3 = jax.random.split(key, 3)
    w_conv = 0.05 * jax.random.normal(k1, (len_feature, len_feature, 3), jnp.float32)
    b_conv = 0.05 * jax.random.normal(k2, (len_feature,), jnp.float32)
    w_cls = 0.05 * jax.random.normal(k3, (num_classes, len_feature), jnp.float32)
    return {"w_conv": w_conv, "b_conv": b_conv, "w_cls": w_cls}


if __name__ == "__main__":
    B, T, D, C = 2, 16, 128, 8
    r_act, r_bkg = 4, 8

    key = jax.random.PRNGKey(0)
    kx, kp = jax.random.split(key)
    x = jax.random.normal(kx, (B, T, D), jnp.float32)
    params = init_params(kp, D, C)

    fwd = jax.jit(functools.partial(model_forward, r_act=r_act, r_bkg=r_bkg))
    outs = fwd(x, params)
    outs = jax.block_until_ready(outs)

    score_act, score_bkg, score_cas, feat_act, feat_bkg, feat = outs
    assert score_act.shape == (B, C)
    assert score_bkg.shape == (B, C)
    assert score_cas.shape == (B, T, C)
    assert feat_act.shape == (B, T // r_act, D)
    assert feat_bkg.shape == (B, T // r_bkg, D)
    assert feat.shape == (B, T, D)
    print("KERNEL_OK")
</pallas_src>

<mosaic_0001>
module attributes {stable_mosaic.version = 11 : i64} {
  func.func @_cas_kernel(%arg0: i32, %arg1: memref<2x16x128xf32, #tpu.memory_space<vmem>>, %arg2: memref<384x128xbf16, #tpu.memory_space<vmem>>, %arg3: memref<1x128xf32, #tpu.memory_space<vmem>>, %arg4: memref<128x128xbf16, #tpu.memory_space<vmem>>, %arg5: memref<2x16x128xf32, #tpu.memory_space<vmem>>, %arg6: memref<2x16x128xf32, #tpu.memory_space<vmem>>, %arg7: memref<2x16x128xf32, #tpu.memory_space<vmem>>) attributes {dimension_semantics = [#tpu.dimension_semantics<parallel>], iteration_bounds = array<i64: 1>, scalar_prefetch = 0 : i64, scratch_operands = 0 : i64, tpu.core_type = #tpu.core_type<tc>, window_params = [{transform_indices = @transform_0, window_bounds = array<i64: 2, 16, 128>}, {pipeline_mode = #tpu.pipeline_mode<synchronous>, transform_indices = @transform_1, window_bounds = array<i64: 384, 128>}, {pipeline_mode = #tpu.pipeline_mode<synchronous>, transform_indices = @transform_2, window_bounds = array<i64: 1, 128>}, {pipeline_mode = #tpu.pipeline_mode<synchronous>, transform_indices = @transform_3, window_bounds = array<i64: 128, 128>}, {transform_indices = @transform_4, window_bounds = array<i64: 2, 16, 128>}, {transform_indices = @transform_5, window_bounds = array<i64: 2, 16, 128>}, {transform_indices = @transform_6, window_bounds = array<i64: 2, 16, 128>}]} {
    %0 = tpu.iota {dimensions = array<i32: 0>} : vector<16x128xi32>
    %c0 = arith.constant 0 : index
    %c0_0 = arith.constant 0 : index
    %c0_1 = arith.constant 0 : index
    %1 = vector.load %arg1[%c0, %c0_0, %c0_1] : memref<2x16x128xf32, #tpu.memory_space<vmem>>, vector<1x16x128xf32>
    %2 = vector.shape_cast %1 : vector<1x16x128xf32> to vector<16x128xf32>
    %c0_i32 = arith.constant 0 : i32
    %3 = vector.broadcast %c0_i32 : i32 to vector<16x128xi32>
    %4 = arith.cmpi sgt, %0, %3 : vector<16x128xi32>
    %c1_i32 = arith.constant 1 : i32
    %5 = tpu.dynamic_rotate %2 by %c1_i32 dim 0 : vector<16x128xf32>, i32 -> vector<16x128xf32>
    %cst = arith.constant 0.000000e+00 : f32
    %6 = vector.broadcast %cst : f32 to vector<16x128xf32>
    %7 = arith.select %4, %5, %6 : vector<16x128xi1>, vector<16x128xf32>
    %c15_i32 = arith.constant 15 : i32
    %8 = vector.broadcast %c15_i32 : i32 to vector<16x128xi32>
    %9 = arith.cmpi slt, %0, %8 : vector<16x128xi32>
    %c15_i32_2 = arith.constant 15 : i32
    %10 = tpu.dynamic_rotate %2 by %c15_i32_2 dim 0 : vector<16x128xf32>, i32 -> vector<16x128xf32>
    %cst_3 = arith.constant 0.000000e+00 : f32
    %11 = vector.broadcast %cst_3 : f32 to vector<16x128xf32>
    %12 = arith.select %9, %10, %11 : vector<16x128xi1>, vector<16x128xf32>
    %13 = tpu.concatenate %7, %2, %12 in 1 : vector<16x128xf32>, vector<16x128xf32>, vector<16x128xf32> -> vector<16x384xf32>
    %c1 = arith.constant 1 : index
    %c0_4 = arith.constant 0 : index
    %c0_5 = arith.constant 0 : index
    %14 = vector.load %arg1[%c1, %c0_4, %c0_5] : memref<2x16x128xf32, #tpu.memory_space<vmem>>, vector<1x16x128xf32>
    %15 = vector.shape_cast %14 : vector<1x16x128xf32> to vector<16x128xf32>
    %c0_i32_6 = arith.constant 0 : i32
    %16 = vector.broadcast %c0_i32_6 : i32 to vector<16x128xi32>
    %17 = arith.cmpi sgt, %0, %16 : vector<16x128xi32>
    %c1_i32_7 = arith.constant 1 : i32
    %18 = tpu.dynamic_rotate %15 by %c1_i32_7 dim 0 : vector<16x128xf32>, i32 -> vector<16x128xf32>
    %cst_8 = arith.constant 0.000000e+00 : f32
    %19 = vector.broadcast %cst_8 : f32 to vector<16x128xf32>
    %20 = arith.select %17, %18, %19 : vector<16x128xi1>, vector<16x128xf32>
    %c15_i32_9 = arith.constant 15 : i32
    %21 = vector.broadcast %c15_i32_9 : i32 to vector<16x128xi32>
    %22 = arith.cmpi slt, %0, %21 : vector<16x128xi32>
    %c15_i32_10 = arith.constant 15 : i32
    %23 = tpu.dynamic_rotate %15 by %c15_i32_10 dim 0 : vector<16x128xf32>, i32 -> vector<16x128xf32>
    %cst_11 = arith.constant 0.000000e+00 : f32
    %24 = vector.broadcast %cst_11 : f32 to vector<16x128xf32>
    %25 = arith.select %22, %23, %24 : vector<16x128xi1>, vector<16x128xf32>
    %26 = tpu.concatenate %20, %15, %25 in 1 : vector<16x128xf32>, vector<16x128xf32>, vector<16x128xf32> -> vector<16x384xf32>
    %27 = tpu.concatenate %13, %26 in 0 : vector<16x384xf32>, vector<16x384xf32> -> vector<32x384xf32>
    %28 = arith.truncf %27 : vector<32x384xf32> to vector<32x384xbf16>
    %c0_12 = arith.constant 0 : index
    %c0_13 = arith.constant 0 : index
    %29 = vector.load %arg2[%c0_12, %c0_13] : memref<384x128xbf16, #tpu.memory_space<vmem>>, vector<384x128xbf16>
    %cst_14 = arith.constant dense<0.000000e+00> : vector<32x128xf32>
    %30 = tpu.matmul %28, %29, %cst_14 {dimension_numbers = #tpu.dot_dimension_numbers<[1], [0], [0], [1], [0, 0, 1, 1], [], []>} : vector<32x384xbf16>, vector<384x128xbf16>, vector<32x128xf32> -> vector<32x128xf32>
    %c0_15 = arith.constant 0 : index
    %c0_16 = arith.constant 0 : index
    %31 = vector.load %arg3[%c0_15, %c0_16] : memref<1x128xf32, #tpu.memory_space<vmem>>, vector<1x128xf32>
    %32 = vector.broadcast %31 : vector<1x128xf32> to vector<32x128xf32>
    %33 = arith.addf %30, %32 : vector<32x128xf32>
    %cst_17 = arith.constant 0.000000e+00 : f32
    %34 = vector.broadcast %cst_17 : f32 to vector<32x128xf32>
    %35 = arith.maximumf %33, %34 : vector<32x128xf32>
    %36 = arith.truncf %35 : vector<32x128xf32> to vector<32x128xbf16>
    %c0_18 = arith.constant 0 : index
    %c0_19 = arith.constant 0 : index
    %37 = vector.load %arg4[%c0_18, %c0_19] : memref<128x128xbf16, #tpu.memory_space<vmem>>, vector<128x128xbf16>
    %cst_20 = arith.constant dense<0.000000e+00> : vector<32x128xf32>
    %38 = tpu.matmul %36, %37, %cst_20 {dimension_numbers = #tpu.dot_dimension_numbers<[1], [0], [0], [1], [0, 0, 1, 1], [], []>} : vector<32x128xbf16>, vector<128x128xbf16>, vector<32x128xf32> -> vector<32x128xf32>
    %39 = tpu.iota {dimensions = array<i32: 1>} : vector<32x128xi32>
    %c8_i32 = arith.constant 8 : i32
    %40 = vector.broadcast %c8_i32 : i32 to vector<32x128xi32>
    %41 = arith.cmpi slt, %39, %40 : vector<32x128xi32>
    %cst_21 = arith.constant -1.000000e+30 : f32
    %42 = vector.broadcast %cst_21 : f32 to vector<32x128xf32>
    %43 = arith.select %41, %38, %42 : vector<32x128xi1>, vector<32x128xf32>
    %cst_22 = arith.constant dense<0xFF800000> : vector<32xf32>
    %44 = vector.multi_reduction <maximumf>, %43, %cst_22 [1] : vector<32x128xf32> to vector<32xf32>
    %45 = vector.shape_cast %44 : vector<32xf32> to vector<32x1xf32>
    %46 = vector.broadcast %45 : vector<32x1xf32> to vector<32x128xf32>
    %47 = arith.subf %43, %46 : vector<32x128xf32>
    %48 = math.exp %47 : vector<32x128xf32>
    %cst_23 = arith.constant dense<0.000000e+00> : vector<32xf32>
    %49 = vector.multi_reduction <add>, %48, %cst_23 [1] : vector<32x128xf32> to vector<32xf32>
    %50 = vector.shape_cast %49 : vector<32xf32> to vector<32x1xf32>
    %51 = tpu.reciprocal %50 {approx = true} : vector<32x1xf32> -> vector<32x1xf32>
    %52 = vector.broadcast %51 : vector<32x1xf32> to vector<32x128xf32>
    %53 = arith.mulf %48, %52 : vector<32x128xf32>
    %54 = vector.shape_cast %35 : vector<32x128xf32> to vector<2x16x128xf32>
    %c0_24 = arith.constant 0 : index
    %c0_25 = arith.constant 0 : index
    %c0_26 = arith.constant 0 : index
    %55 = vector.load %arg5[%c0_24, %c0_25, %c0_26] : memref<2x16x128xf32, #tpu.memory_space<vmem>>, vector<2x16x128xf32>
    tpu.vector_store %arg5[%c0_24, %c0_25, %c0_26], %54 {strides = array<i32>} : memref<2x16x128xf32, #tpu.memory_space<vmem>>, vector<2x16x128xf32>,
    %56 = vector.shape_cast %38 : vector<32x128xf32> to vector<2x16x128xf32>
    %c0_27 = arith.constant 0 : index
    %c0_28 = arith.constant 0 : index
    %c0_29 = arith.constant 0 : index
    %57 = vector.load %arg6[%c0_27, %c0_28, %c0_29] : memref<2x16x128xf32, #tpu.memory_space<vmem>>, vector<2x16x128xf32>
    tpu.vector_store %arg6[%c0_27, %c0_28, %c0_29], %56 {strides = array<i32>} : memref<2x16x128xf32, #tpu.memory_space<vmem>>, vector<2x16x128xf32>,
    %58 = vector.shape_cast %53 : vector<32x128xf32> to vector<2x16x128xf32>
    %c0_30 = arith.constant 0 : index
    %c0_31 = arith.constant 0 : index
    %c0_32 = arith.constant 0 : index
    %59 = vector.load %arg7[%c0_30, %c0_31, %c0_32] : memref<2x16x128xf32, #tpu.memory_space<vmem>>, vector<2x16x128xf32>
    tpu.vector_store %arg7[%c0_30, %c0_31, %c0_32], %58 {strides = array<i32>} : memref<2x16x128xf32, #tpu.memory_space<vmem>>, vector<2x16x128xf32>,
    return
  }
  func.func @transform_0(%arg0: i32) -> (i32, i32, i32) {
    %c0_i32 = arith.constant 0 : i32
    %c0_i32_0 = arith.constant 0 : i32
    %c0_i32_1 = arith.constant 0 : i32
    return %arg0, %c0_i32, %c0_i32_0 : i32, i32, i32
  }
  func.func @transform_1(%arg0: i32) -> (i32, i32) {
    %c0_i32 = arith.constant 0 : i32
    %c0_i32_0 = arith.constant 0 : i32
    %c0_i32_1 = arith.constant 0 : i32
    return %c0_i32, %c0_i32_0 : i32, i32
  }
  func.func @transform_2(%arg0: i32) -> (i32, i32) {
    %c0_i32 = arith.constant 0 : i32
    %c0_i32_0 = arith.constant 0 : i32
    %c0_i32_1 = arith.constant 0 : i32
    return %c0_i32, %c0_i32_0 : i32, i32
  }
  func.func @transform_3(%arg0: i32) -> (i32, i32) {
    %c0_i32 = arith.constant 0 : i32
    %c0_i32_0 = arith.constant 0 : i32
    %c0_i32_1 = arith.constant 0 : i32
    return %c0_i32, %c0_i32_0 : i32, i32
  }
  func.func @transform_4(%arg0: i32) -> (i32, i32, i32) {
    %c0_i32 = arith.constant 0 : i32
    %c0_i32_0 = arith.constant 0 : i32
    %c0_i32_1 = arith.constant 0 : i32
    return %arg0, %c0_i32, %c0_i32_0 : i32, i32, i32
  }
  func.func @transform_5(%arg0: i32) -> (i32, i32, i32) {
    %c0_i32 = arith.constant 0 : i32
    %c0_i32_0 = arith.constant 0 : i32
    %c0_i32_1 = arith.constant 0 : i32
    return %arg0, %c0_i32, %c0_i32_0 : i32, i32, i32
  }
  func.func @transform_6(%arg0: i32) -> (i32, i32, i32) {
    %c0_i32 = arith.constant 0 : i32
    %c0_i32_0 = arith.constant 0 : i32
    %c0_i32_1 = arith.constant 0 : i32
    return %arg0, %c0_i32, %c0_i32_0 : i32, i32, i32
  }
}

</mosaic_0001>

<llo_original>
// kernel: model_forward.1
$region0: #{model_forward.1}
  #allocation0 [shape = 'u32[]', space=smem, size = 0x4, offset = 0x4, fixed_abs, tag = 'smem constant byte address 0x4 - core index']
  #allocation1 [shape = 'u32[72,128]{1,0:T(1,128)}', space=vmem, size = 0x9000, scoped, tag = 'internal scratch']
  %s0 = inlined_call_operand.vmem [shape: f32[2,16,128], index: 0, kind: input, shape index: {}]
  %s1 = inlined_call_operand.vmem [shape: bf16[384,128], index: 1, kind: input, shape index: {}]
  %s2 = inlined_call_operand.vmem [shape: f32[1,128], index: 2, kind: input, shape index: {}]
  %s3 = inlined_call_operand.vmem [shape: bf16[128,128], index: 3, kind: input, shape index: {}]
  %s4 = inlined_call_operand.vmem [shape: f32[2,16,128], index: 4, kind: output, shape index: {0}]
  %s5 = inlined_call_operand.vmem [shape: f32[2,16,128], index: 5, kind: output, shape index: {1}]
  %s6 = inlined_call_operand.vmem [shape: f32[2,16,128], index: 6, kind: output, shape index: {2}]
  %7 = xla_tuple %s4, %s5, %s6
  %s8 = sld [smem:[#allocation0]]
  $region42: #{model_forward.1} parent=0
    _
  %s10 = ssub.s32 1, %s8
  %s11 = scalar_select 0, %s10, %s8
  // Predicated region
  $region2: #{model_forward.1} parent=0 // pred_check
    _
  $region3: #{model_forward.1} parent=0 // pred_check_branch
    %13 = sbr.rel (0) target = $region5
  $region4: #{model_forward.1} parent=0 // pred_region
    _
  $region5: #{model_forward.1} parent=0 // pred_fallthru
    _
  // Predicated region
  $region6: #{model_forward.1} parent=0 // pred_check
    _
  $region7: #{model_forward.1} parent=0 // pred_check_branch
    %15 = sbr.rel (0) target = $region9
  $region8: #{model_forward.1} parent=0 // pred_region
    _
  $region9: #{model_forward.1} parent=0 // pred_fallthru
    _
  // Predicated region
  $region10: #{model_forward.1} parent=0 // pred_check
    _
  $region11: #{model_forward.1} parent=0 // pred_check_branch
    %17 = sbr.rel (0) target = $region13
  $region12: #{model_forward.1} parent=0 // pred_region
    _
  $region13: #{model_forward.1} parent=0 // pred_fallthru
    _
  // Predicated region
  $region14: #{model_forward.1} parent=0 // pred_check
    _
  $region15: #{model_forward.1} parent=0 // pred_check_branch
    %19 = sbr.rel (0) target = $region17
  $region16: #{model_forward.1} parent=0 // pred_region
    _
  $region17: #{model_forward.1} parent=0 // pred_fallthru
    _
  %v20 = vlaneseq
  %v21 = vshrl.u32 %v20, 7
  %v22 = vadd.s32 %v21, 8
  %v23 = vld [vmem:[%s0] sm:$0xff]
  %v24 = vld [vmem:[%s0 + $0x8] sm:$0xff]
  %vm25 = vcmp.gt.s32.totalorder %v21, 0
  %vm26 = vcmp.gt.s32.totalorder %v22, 0
  %v27 = vrot.slane %v23, 7
  %v28 = vrot.slane %v24, 7
  %vm29 = vcmp.lt.s32.totalorder %v21, 1
  %v30 = vsel %vm29, %v27, %v28
  %v31 = vsel %vm29, %v28, %v27
  %v32 = vsel %vm25, %v31, 0.0
  %v33 = vsel %vm26, %v30, 0.0
  %vm34 = vcmp.lt.s32.totalorder %v21, 15
  %vm35 = vcmp.lt.s32.totalorder %v22, 15
  %v36 = vrot.slane %v23, 1
  %v37 = vrot.slane %v24, 1
  %vm38 = vcmp.lt.s32.totalorder %v21, 7
  %v39 = vsel %vm38, %v36, %v37
  %v40 = vsel %vm38, %v37, %v36
  %v41 = vsel %vm34, %v39, 0.0
  %v42 = vsel %vm35, %v40, 0.0
  %s43 = scalar_lea.vmem %s0, 16
  %v44 = vld [vmem:[%s43] sm:$0xff]
  %v45 = vld [vmem:[%s43 + $0x8] sm:$0xff]
  %v46 = vrot.slane %v44, 7
  %v47 = vrot.slane %v45, 7
  %v48 = vsel %vm29, %v46, %v47
  %v49 = vsel %vm29, %v47, %v46
  %v50 = vsel %vm25, %v49, 0.0
  %v51 = vsel %vm26, %v48, 0.0
  %v52 = vrot.slane %v44, 1
  %v53 = vrot.slane %v45, 1
  %v54 = vsel %vm38, %v52, %v53
  %v55 = vsel %vm38, %v53, %v52
  %v56 = vsel %vm34, %v54, 0.0
  %v57 = vsel %vm35, %v55, 0.0
  %v58 = vpack.c.bf16 %v33, %v32
  %v59 = vpack.c.bf16 %v24, %v23
  %v60 = vpack.c.bf16 %v42, %v41
  %v61 = vpack.c.bf16 %v51, %v50
  %v62 = vpack.c.bf16 %v45, %v44
  %v63 = vpack.c.bf16 %v57, %v56
  %v64 = vld [vmem:[%s1] sm:$0xf]
  %v65 = vld [vmem:[%s1 + $0x4] sm:$0xf]
  %v66 = vld [vmem:[%s1 + $0x8] sm:$0xf]
  %v67 = vld [vmem:[%s1 + $0xc] sm:$0xf]
  %v68 = vld [vmem:[%s1 + $0x10] sm:$0xf]
  %v69 = vld [vmem:[%s1 + $0x14] sm:$0xf]
  %v70 = vld [vmem:[%s1 + $0x18] sm:$0xf]
  %v71 = vld [vmem:[%s1 + $0x1c] sm:$0xf]
  %v72 = vld [vmem:[%s1 + $0x20] sm:$0xf]
  %v73 = vld [vmem:[%s1 + $0x24] sm:$0xf]
  %v74 = vld [vmem:[%s1 + $0x28] sm:$0xf]
  %v75 = vld [vmem:[%s1 + $0x2c] sm:$0xf]
  %v76 = vld [vmem:[%s1 + $0x30] sm:$0xf]
  %v77 = vld [vmem:[%s1 + $0x34] sm:$0xf]
  %v78 = vld [vmem:[%s1 + $0x38] sm:$0xf]
  %v79 = vld [vmem:[%s1 + $0x3c] sm:$0xf]
  %v80 = vld [vmem:[%s1 + $0x40] sm:$0xf]
  %v81 = vld [vmem:[%s1 + $0x44] sm:$0xf]
  %v82 = vld [vmem:[%s1 + $0x48] sm:$0xf]
  %v83 = vld [vmem:[%s1 + $0x4c] sm:$0xf]
  %v84 = vld [vmem:[%s1 + $0x50] sm:$0xf]
  %v85 = vld [vmem:[%s1 + $0x54] sm:$0xf]
  %v86 = vld [vmem:[%s1 + $0x58] sm:$0xf]
  %v87 = vld [vmem:[%s1 + $0x5c] sm:$0xf]
  %v88 = vld [vmem:[%s1 + $0x60] sm:$0xf]
  %v89 = vld [vmem:[%s1 + $0x64] sm:$0xf]
  %v90 = vld [vmem:[%s1 + $0x68] sm:$0xf]
  %v91 = vld [vmem:[%s1 + $0x6c] sm:$0xf]
  %v92 = vld [vmem:[%s1 + $0x70] sm:$0xf]
  %v93 = vld [vmem:[%s1 + $0x74] sm:$0xf]
  %v94 = vld [vmem:[%s1 + $0x78] sm:$0xf]
  %v95 = vld [vmem:[%s1 + $0x7c] sm:$0xf]
  %v96 = vld [vmem:[%s1 + $0x80] sm:$0xf]
  %v97 = vld [vmem:[%s1 + $0x84] sm:$0xf]
  %v98 = vld [vmem:[%s1 + $0x88] sm:$0xf]
  %v99 = vld [vmem:[%s1 + $0x8c] sm:$0xf]
  %v100 = vld [vmem:[%s1 + $0x90] sm:$0xf]
  %v101 = vld [vmem:[%s1 + $0x94] sm:$0xf]
  %v102 = vld [vmem:[%s1 + $0x98] sm:$0xf]
  %v103 = vld [vmem:[%s1 + $0x9c] sm:$0xf]
  %v104 = vld [vmem:[%s1 + $0xa0] sm:$0xf]
  %v105 = vld [vmem:[%s1 + $0xa4] sm:$0xf]
  %v106 = vld [vmem:[%s1 + $0xa8] sm:$0xf]
  %v107 = vld [vmem:[%s1 + $0xac] sm:$0xf]
  %v108 = vld [vmem:[%s1 + $0xb0] sm:$0xf]
  %v109 = vld [vmem:[%s1 + $0xb4] sm:$0xf]
  %v110 = vld [vmem:[%s1 + $0xb8] sm:$0xf]
  %v111 = vld [vmem:[%s1 + $0xbc] sm:$0xf]
  %v112 = vld [vmem:[%s2] sm:$0x1]
  %v114 = vperm.slane %v112, 0
  %v164 = vunpack.c.l.b16 %v64
  %v165 = vunpack.c.l.b16 %v65
  %v166 = vunpack.c.l.b16 %v66
  %v167 = vunpack.c.l.b16 %v67
  %v168 = vunpack.c.l.b16 %v68
  %v169 = vunpack.c.l.b16 %v69
  %v170 = vunpack.c.l.b16 %v70
  %v171 = vunpack.c.l.b16 %v71
  %v172 = vunpack.c.l.b16 %v72
  %v173 = vunpack.c.l.b16 %v73
  %v174 = vunpack.c.l.b16 %v74
  %v175 = vunpack.c.l.b16 %v75
  %v176 = vunpack.c.l.b16 %v76
  %v177 = vunpack.c.l.b16 %v77
  %v178 = vunpack.c.l.b16 %v78
  %v179 = vunpack.c.l.b16 %v79
  %v180 = vunpack.c.l.b16 %v80
  %v181 = vunpack.c.l.b16 %v81
  %v182 = vunpack.c.l.b16 %v82
  %v183 = vunpack.c.l.b16 %v83
  %v184 = vunpack.c.l.b16 %v84
  %v185 = vunpack.c.l.b16 %v85
  %v186 = vunpack.c.l.b16 %v86
  %v187 = vunpack.c.l.b16 %v87
  %v188 = vunpack.c.l.b16 %v88
  %v189 = vunpack.c.l.b16 %v89
  %v190 = vunpack.c.l.b16 %v90
  %v191 = vunpack.c.l.b16 %v91
  %v192 = vunpack.c.l.b16 %v92
  %v193 = vunpack.c.l.b16 %v93
  %v194 = vunpack.c.l.b16 %v94
  %v195 = vunpack.c.l.b16 %v95
  %v196 = vunpack.c.l.b16 %v96
  %v197 = vunpack.c.l.b16 %v97
  %v198 = vunpack.c.l.b16 %v98
  %v199 = vunpack.c.l.b16 %v99
  %v200 = vunpack.c.l.b16 %v100
  %v201 = vunpack.c.l.b16 %v101
  %v202 = vunpack.c.l.b16 %v102
  %v203 = vunpack.c.l.b16 %v103
  %v204 = vunpack.c.l.b16 %v104
  %v205 = vunpack.c.l.b16 %v105
  %v206 = vunpack.c.l.b16 %v106
  %v207 = vunpack.c.l.b16 %v107
  %v208 = vunpack.c.l.b16 %v108
  %v209 = vunpack.c.l.b16 %v109
  %v210 = vunpack.c.l.b16 %v110
  %v211 = vunpack.c.l.b16 %v111
  %v212 = vpack.c.b16 %v165, %v164
  %v213 = vpack.c.b16 %v167, %v166
  %v214 = vpack.c.b16 %v169, %v168
  %v215 = vpack.c.b16 %v171, %v170
  %v216 = vpack.c.b16 %v173, %v172
  %v217 = vpack.c.b16 %v175, %v174
  %v218 = vpack.c.b16 %v177, %v176
  %v219 = vpack.c.b16 %v179, %v178
  %v220 = vpack.c.b16 %v181, %v180
  %v221 = vpack.c.b16 %v183, %v182
  %v222 = vpack.c.b16 %v185, %v184
  %v223 = vpack.c.b16 %v187, %v186
  %v224 = vpack.c.b16 %v189, %v188
  %v225 = vpack.c.b16 %v191, %v190
  %v226 = vpack.c.b16 %v193, %v192
  %v227 = vpack.c.b16 %v195, %v194
  %v228 = vpack.c.b16 %v197, %v196
  %v229 = vpack.c.b16 %v199, %v198
  %v230 = vpack.c.b16 %v201, %v200
  %v231 = vpack.c.b16 %v203, %v202
  %v232 = vpack.c.b16 %v205, %v204
  %v233 = vpack.c.b16 %v207, %v206
  %v234 = vpack.c.b16 %v209, %v208
  %v235 = vpack.c.b16 %v211, %v210
  %260 = vmatpush.bf16.msra.mxu0 %v219
  %261 = vmatpush.bf16.msra.mxu0 %v218
  %262 = vmatpush.bf16.msra.mxu0 %v217
  %263 = vmatpush.bf16.msra.mxu0 %v216
  %264 = vmatpush.bf16.msra.mxu0 %v215
  %265 = vmatpush.bf16.msra.mxu0 %v214
  %266 = vmatpush.bf16.msra.mxu0 %v213
  %267 = vmatpush.bf16.msra.mxu0 %v212
  %268 = vmatmul.bf16.gmra.mxu0 %v58
  %v269 = vpop.f32.mrf.mxu0
  %v270 = vadd.f32 %v114, %v269
  %v271 = vpop.f32.mrf.mxu0
  %v272 = vadd.f32 %v114, %v271
  %273 = vmatmul.bf16.gmra.mxu0 %v61
  %v274 = vpop.f32.mrf.mxu0
  %v275 = vadd.f32 %v114, %v274
  %v276 = vpop.f32.mrf.mxu0
  %v277 = vadd.f32 %v114, %v276
  %278 = vdwg.mxu0
  %279 = vmatpush.bf16.msra.mxu0 %v227
  %280 = vmatpush.bf16.msra.mxu0 %v226
  %281 = vmatpush.bf16.msra.mxu0 %v225
  %282 = vmatpush.bf16.msra.mxu0 %v224
  %283 = vmatpush.bf16.msra.mxu0 %v223
  %284 = vmatpush.bf16.msra.mxu0 %v222
  %285 = vmatpush.bf16.msra.mxu0 %v221
  %286 = vmatpush.bf16.msra.mxu0 %v220
  %287 = vmatmul.bf16.gmra.mxu0 %v59
  %v288 = vpop.f32.mrf.mxu0
  %v289 = vadd.f32 %v270, %v288
  %v290 = vpop.f32.mrf.mxu0
  %v291 = vadd.f32 %v272, %v290
  %292 = vmatmul.bf16.gmra.mxu0 %v62
  %v293 = vpop.f32.mrf.mxu0
  %v294 = vadd.f32 %v275, %v293
  %v295 = vpop.f32.mrf.mxu0
  %v296 = vadd.f32 %v277, %v295
  %297 = vdwg.mxu0
  %298 = vmatpush.bf16.msra.mxu0 %v235
  %299 = vmatpush.bf16.msra.mxu0 %v234
  %300 = vmatpush.bf16.msra.mxu0 %v233
  %301 = vmatpush.bf16.msra.mxu0 %v232
  %302 = vmatpush.bf16.msra.mxu0 %v231
  %303 = vmatpush.bf16.msra.mxu0 %v230
  %304 = vmatpush.bf16.msra.mxu0 %v229
  %305 = vmatpush.bf16.msra.mxu0 %v228
  %306 = vmatmul.bf16.gmra.mxu0 %v60
  %v307 = vpop.f32.mrf.mxu0
  %v308 = vadd.f32 %v289, %v307
  %v309 = vpop.f32.mrf.mxu0
  %v310 = vadd.f32 %v291, %v309
  %311 = vmatmul.bf16.gmra.mxu0 %v63
  %v312 = vpop.f32.mrf.mxu0
  %v313 = vadd.f32 %v294, %v312
  %v314 = vpop.f32.mrf.mxu0
  %v315 = vadd.f32 %v296, %v314
  %316 = vdwg.mxu0
  %v317 = vmax.f32 %v308, 0.0
  %v318 = vmax.f32 %v310, 0.0
  %v319 = vmax.f32 %v313, 0.0
  %v320 = vmax.f32 %v315, 0.0
  %v321 = vpack.c.bf16 %v318, %v317
  %v322 = vpack.c.bf16 %v320, %v319
  %v323 = vld [vmem:[%s3] sm:$0xf]
  %v324 = vld [vmem:[%s3 + $0x4] sm:$0xf]
  %v325 = vld [vmem:[%s3 + $0x8] sm:$0xf]
  %v326 = vld [vmem:[%s3 + $0xc] sm:$0xf]
  %v327 = vld [vmem:[%s3 + $0x10] sm:$0xf]
  %v328 = vld [vmem:[%s3 + $0x14] sm:$0xf]
  %v329 = vld [vmem:[%s3 + $0x18] sm:$0xf]
  %v330 = vld [vmem:[%s3 + $0x1c] sm:$0xf]
  %v331 = vld [vmem:[%s3 + $0x20] sm:$0xf]
  %v332 = vld [vmem:[%s3 + $0x24] sm:$0xf]
  %v333 = vld [vmem:[%s3 + $0x28] sm:$0xf]
  %v334 = vld [vmem:[%s3 + $0x2c] sm:$0xf]
  %v335 = vld [vmem:[%s3 + $0x30] sm:$0xf]
  %v336 = vld [vmem:[%s3 + $0x34] sm:$0xf]
  %v337 = vld [vmem:[%s3 + $0x38] sm:$0xf]
  %v338 = vld [vmem:[%s3 + $0x3c] sm:$0xf]
  %v355 = vunpack.c.l.b16 %v323
  %v356 = vunpack.c.l.b16 %v324
  %v357 = vunpack.c.l.b16 %v325
  %v358 = vunpack.c.l.b16 %v326
  %v359 = vunpack.c.l.b16 %v327
  %v360 = vunpack.c.l.b16 %v328
  %v361 = vunpack.c.l.b16 %v329
  %v362 = vunpack.c.l.b16 %v330
  %v363 = vunpack.c.l.b16 %v331
  %v364 = vunpack.c.l.b16 %v332
  %v365 = vunpack.c.l.b16 %v333
  %v366 = vunpack.c.l.b16 %v334
  %v367 = vunpack.c.l.b16 %v335
  %v368 = vunpack.c.l.b16 %v336
  %v369 = vunpack.c.l.b16 %v337
  %v370 = vunpack.c.l.b16 %v338
  %v371 = vpack.c.b16 %v356, %v355
  %v372 = vpack.c.b16 %v358, %v357
  %v373 = vpack.c.b16 %v360, %v359
  %v374 = vpack.c.b16 %v362, %v361
  %v375 = vpack.c.b16 %v364, %v363
  %v376 = vpack.c.b16 %v366, %v365
  %v377 = vpack.c.b16 %v368, %v367
  %v378 = vpack.c.b16 %v370, %v369
  %387 = vmatpush.bf16.msra.mxu0 %v378
  %388 = vmatpush.bf16.msra.mxu0 %v377
  %389 = vmatpush.bf16.msra.mxu0 %v376
  %390 = vmatpush.bf16.msra.mxu0 %v375
  %391 = vmatpush.bf16.msra.mxu0 %v374
  %392 = vmatpush.bf16.msra.mxu0 %v373
  %393 = vmatpush.bf16.msra.mxu0 %v372
  %394 = vmatpush.bf16.msra.mxu0 %v371
  %395 = vmatmul.bf16.gmra.mxu0 %v321
  %v396 = vpop.f32.mrf.mxu0
  %v397 = vadd.f32 0.0, %v396
  %v398 = vpop.f32.mrf.mxu0
  %v399 = vadd.f32 0.0, %v398
  %400 = vmatmul.bf16.gmra.mxu0 %v322
  %v401 = vpop.f32.mrf.mxu0
  %v402 = vadd.f32 0.0, %v401
  %v403 = vpop.f32.mrf.mxu0
  %v404 = vadd.f32 0.0, %v403
  %405 = vdwg.mxu0
  %v406 = vlaneseq
  %v407 = vand.u32 %v406, 127
  %vm408 = vcmp.lt.s32.totalorder %v407, 8
  %v409 = vsel %vm408, %v397, -1e+30
  %v410 = vsel %vm408, %v399, -1e+30
  %v411 = vsel %vm408, %v402, -1e+30
  %v412 = vsel %vm408, %v404, -1e+30
  %413 = vmax.xlane.f32.xlu0 %v409
  %v414 = vpop.xlane.xlu0 %413
  %415 = vmax.xlane.f32.xlu0 %v410
  %v416 = vpop.xlane.xlu0 %415
  %417 = vmax.xlane.f32.xlu0 %v411
  %v418 = vpop.xlane.xlu0 %417
  %419 = vmax.xlane.f32.xlu0 %v412
  %v420 = vpop.xlane.xlu0 %419
  %v421 = vsub.f32 %v409, %v414
  %v422 = vsub.f32 %v410, %v416
  %v423 = vsub.f32 %v411, %v418
  %v424 = vsub.f32 %v412, %v420
  %v425 = vmul.f32 %v421, 1.442695
  %v426 = vpow.pop %v425
  %v427 = vmul.f32 %v422, 1.442695
  %v428 = vpow.pop %v427
  %v429 = vmul.f32 %v423, 1.442695
  %v430 = vpow.pop %v429
  %v431 = vmul.f32 %v424, 1.442695
  %v432 = vpow.pop %v431
  %433 = vadd.xlane.f32.xlu0 %v426
  %v434 = vpop.xlane.xlu0 %433
  %435 = vadd.xlane.f32.xlu0 %v428
  %v436 = vpop.xlane.xlu0 %435
  %437 = vadd.xlane.f32.xlu0 %v430
  %v438 = vpop.xlane.xlu0 %437
  %439 = vadd.xlane.f32.xlu0 %v432
  %v440 = vpop.xlane.xlu0 %439
  %v441 = vrcp.pop %v434
  %v442 = vrcp.pop %v436
  %v443 = vrcp.pop %v438
  %v444 = vrcp.pop %v440
  %v445 = vmul.f32 %v426, %v441
  %v446 = vmul.f32 %v428, %v442
  %v447 = vmul.f32 %v430, %v443
  %v448 = vmul.f32 %v432, %v444
  %449 = vst [vmem:[%s4] sm:$0xff] %v317
  %450 = vst [vmem:[%s4 + $0x8] sm:$0xff] %v318
  %451 = vst [vmem:[%s4 + $0x10] sm:$0xff] %v319
  %452 = vst [vmem:[%s4 + $0x18] sm:$0xff] %v320
  %453 = vst [vmem:[%s5] sm:$0xff] %v397
  %454 = vst [vmem:[%s5 + $0x8] sm:$0xff] %v399
  %455 = vst [vmem:[%s5 + $0x10] sm:$0xff] %v402
  %456 = vst [vmem:[%s5 + $0x18] sm:$0xff] %v404
  %457 = vst [vmem:[%s6] sm:$0xff] %v445
  %458 = vst [vmem:[%s6 + $0x8] sm:$0xff] %v446
  %459 = vst [vmem:[%s6 + $0x10] sm:$0xff] %v447
  %460 = vst [vmem:[%s6 + $0x18] sm:$0xff] %v448
  // Predicated region
  $region18: #{model_forward.1} parent=0 // pred_check
    _
  $region19: #{model_forward.1} parent=0 // pred_check_branch
    %462 = sbr.rel (0) target = $region21
  $region20: #{model_forward.1} parent=0 // pred_region
    _
  $region21: #{model_forward.1} parent=0 // pred_fallthru
    _
  // Predicated region
  $region22: #{model_forward.1} parent=0 // pred_check
    _
  $region23: #{model_forward.1} parent=0 // pred_check_branch
    %464 = sbr.rel (0) target = $region25
  $region24: #{model_forward.1} parent=0 // pred_region
    _
  $region25: #{model_forward.1} parent=0 // pred_fallthru
    _
  // Predicated region
  $region26: #{model_forward.1} parent=0 // pred_check
    _
  $region27: #{model_forward.1} parent=0 // pred_check_branch
    %466 = sbr.rel (0) target = $region29
  $region28: #{model_forward.1} parent=0 // pred_region
    _
  $region29: #{model_forward.1} parent=0 // pred_fallthru
    _
  // Predicated region
  $region30: #{model_forward.1} parent=0 // pred_check
    _
  $region31: #{model_forward.1} parent=0 // pred_check_branch
    %468 = sbr.rel (0) target = $region33
  $region32: #{model_forward.1} parent=0 // pred_region
    _
  $region33: #{model_forward.1} parent=0 // pred_fallthru
    _
  // Predicated region
  $region34: #{model_forward.1} parent=0 // pred_check
    _
  $region35: #{model_forward.1} parent=0 // pred_check_branch
    %470 = sbr.rel (0) target = $region37
  $region36: #{model_forward.1} parent=0 // pred_region
    _
  $region37: #{model_forward.1} parent=0 // pred_fallthru
    _
  // Predicated region
  $region38: #{model_forward.1} parent=0 // pred_check
    _
  $region39: #{model_forward.1} parent=0 // pred_check_branch
    %472 = sbr.rel (0) target = $region41
  $region40: #{model_forward.1} parent=0 // pred_region
    _
  $region41: #{model_forward.1} parent=0 // pred_fallthru
    _

</llo_original>
